<compile_context>
chip_gen: v7x
topology: tpu7x:2x2x1
jax: 0.10.0
libtpu: 0.0.40
codegen_flags: <defaults>
</compile_context>

<pallas_src>
import functools

import jax
import jax.numpy as jnp
import numpy as np
from jax import lax
from jax.experimental import pallas as pl
from jax.experimental.pallas import tpu as pltpu

LANES = 128


def _round_up(x, m):
    return (x + m - 1) // m * m


# ----------------------------------------------------------------------------
# Pallas kernel: one batch tile of TB rows.
# ----------------------------------------------------------------------------
def caser_kernel(act_ref, wall_ref, wfch_ref, bfc_ref, o_ref, *, L, F, KP, GW):
    act = act_ref[...]                               # (TB, ACT_W) merged stream
    E = act[:, :KP]                                  # zero-padded item embeds
    qpz = act[:, KP:KP + F]                          # Q_prime[:, :F]
    ub = act[:, KP + F:KP + 2 * F + 1]               # [user_emb | item_bias]
    qo = act[:, KP + 2 * F + 1:KP + 3 * F + 2]       # [Q_prime[:, F:] | 1.0]

    # One fused MXU matmul.  Columns are grouped by time offset t: each group
    # is GW=128 lanes, lane hi*d+c holds the height-(hi+1) conv at offset t
    # (invalid (h, t) positions duplicate the t=0 columns so max is exact).
    # The final group holds the vertical conv already folded through the FC.
    H = jnp.dot(E, wall_ref[...], preferred_element_type=jnp.float32)

    # Max-pool over time: full-vreg 128-lane VPU maxima, no sub-vreg slices,
    # no lane concat (pooled lane hi*d+c == pooled height-(hi+1) channel c).
    pooled = H[:, :GW]
    for t in range(1, L):
        pooled = jnp.maximum(pooled, H[:, t * GW:(t + 1) * GW])

    z_v = H[:, L * GW:L * GW + F]
    # TODO(synk): nn.Dropout(0.05) implemented as identity (inference mode).
    z = z_v + jnp.dot(pooled, wfch_ref[...],
                      preferred_element_type=jnp.float32) + bfc_ref[...]

    # res[b] = sum(z*Qpz) + sum(U*Qpu) + b_item, computed as two small A@B^T
    # matmuls (ones @ M^T) so the result is lane-major (8, TB) and the output
    # store is dense/unmasked instead of a (TB, 1) masked-store column.
    dn = (((1,), (1,)), ((), ()))
    res_t = (lax.dot_general(jnp.ones((8, F), jnp.float32), z * qpz, dn,
                             preferred_element_type=jnp.float32)
             + lax.dot_general(jnp.ones((8, F + 1), jnp.float32), ub * qo, dn,
                               preferred_element_type=jnp.float32))
    o_ref[...] = res_t.astype(o_ref.dtype)           # (8, TB) lane-dense


# ----------------------------------------------------------------------------
# Host-side weight packing (run ONCE at model-load time, not per forward).
# Exact algebraic refactor of the module: conv biases folded through the FC.
# ----------------------------------------------------------------------------
def pack_params(params, L, d, d_prime, F):
    Wfc = np.asarray(params["Wfc"], np.float32)      # (F, d'F + dL)
    bfc = np.asarray(params["bfc"], np.float32)      # (F,)
    Wv = np.asarray(params["Wv"], np.float32)        # (d', L)
    bv = np.asarray(params["bv"], np.float32)        # (d',)
    Wh_list = [np.asarray(w, np.float32) for w in params["Wh_list"]]
    bh_list = [np.asarray(b, np.float32) for b in params["bh_list"]]

    KP = _round_up(L * F, LANES)                     # padded contraction dim
    GW = _round_up(L * d, LANES)                     # lanes per time-offset group
    NV = _round_up(F, LANES)                         # lanes for vertical group
    N = L * GW + NV

    Wfc_v = Wfc[:, :d_prime * F].reshape(F, d_prime, F)          # (k, c, f)
    Wfc_hT = Wfc[:, d_prime * F:].T                              # (d*L, F)

    # Vertical conv folded through the FC layer; all conv biases folded too.
    W_vfc = np.einsum("cl,kcf->lfk", Wv, Wfc_v).reshape(L * F, F)
    bfc_fused = bfc + np.einsum("c,kcf->k", bv, Wfc_v)
    bfc_fused = (bfc_fused + np.concatenate(bh_list) @ Wfc_hT).reshape(1, F)

    W_all = np.zeros((KP, N), np.float32)
    for hi in range(L):                              # kernel height h = hi + 1
        h = hi + 1
        blk = np.transpose(Wh_list[hi], (1, 2, 0)).reshape(h * F, d)
        for t in range(L):
            te = t if t <= L - h else 0              # invalid offsets dup t=0
            c0 = t * GW + hi * d
            W_all[te * F:(te + h) * F, c0:c0 + d] = blk
    W_all[:L * F, L * GW:L * GW + F] = W_vfc

    Wfc_hT_pad = np.zeros((GW, F), np.float32)       # zero rows for pad lanes
    Wfc_hT_pad[:d * L, :] = Wfc_hT

    return (jnp.asarray(W_all), jnp.asarray(Wfc_hT_pad), jnp.asarray(bfc_fused))


# ----------------------------------------------------------------------------
# Wrapper: embedding gathers + merged activation stream + batch-tiled kernel.
# ----------------------------------------------------------------------------
@jax.jit
def caser_forward(packed, user_id, seq, item_id):
    B, L = seq.shape
    F = packed["P"].shape[1]
    W_all, Wfc_hT, bfc = packed["W_all"], packed["Wfc_hT"], packed["bfc"]
    KP, N = W_all.shape
    GW = Wfc_hT.shape[0]

    # TODO(synk): embedding gathers stay in XLA; fusing them into the kernel
    # (scalar-prefetched indices + in-kernel gathers from VMEM/HBM tables)
    # would remove this HBM write+read round trip.
    E = packed["Q"][seq].reshape(B, L * F)           # (B, L*F)
    U = packed["P"][user_id]                         # (B, F)
    Qp = packed["Qp"][item_id]                       # (B, 2F)
    Bi = packed["b"][item_id]                        # (B, 1)

    # Merge every per-row stream into ONE lane-dense activation block:
    #   [ E | 0-pad to KP | Qpz | U | item_bias | Qpu | 1.0 | 0-pad ].
    side = jnp.concatenate(
        [Qp[:, :F], U, Bi, Qp[:, F:], jnp.ones((B, 1), jnp.float32)], axis=1)
    act_w = _round_up(KP + 3 * F + 2, LANES)
    act = jnp.concatenate(
        [E, jnp.zeros((B, KP - L * F), jnp.float32), side,
         jnp.zeros((B, act_w - KP - 3 * F - 2), jnp.float32)], axis=1)

    # Batch tiling: one full-array block for small B; otherwise 128-aligned
    # tiles capped at 1024 rows with >= 2 grid steps (v7x has 2 TensorCores).
    if B < 256:
        TB = _round_up(B, 8)
    else:
        TB = min(1024, max(128, (B // 2) // 128 * 128))
    Bp = _round_up(B, TB)
    if Bp != B:
        act = jnp.pad(act, ((0, Bp - B), (0, 0)))

    kernel = functools.partial(caser_kernel, L=L, F=F, KP=KP, GW=GW)

    flops = 2 * Bp * KP * N + 2 * Bp * GW * F + 2 * 8 * Bp * (2 * F + 1)
    bytes_accessed = (Bp * act_w + KP * N + GW * F + F + 8 * Bp) * 4

    out = pl.pallas_call(
        kernel,
        out_shape=jax.ShapeDtypeStruct((8, Bp), jnp.float32),
        grid=(Bp // TB,),
        in_specs=[
            pl.BlockSpec((TB, act_w), lambda i: (i, 0)),   # merged activations
            pl.BlockSpec((KP, N), lambda i: (0, 0)),       # fused conv weights
            pl.BlockSpec((GW, F), lambda i: (0, 0)),       # FC (horizontal)
            pl.BlockSpec((1, F), lambda i: (0, 0)),        # fused bias
        ],
        out_specs=pl.BlockSpec((8, TB), lambda i: (0, i)),
        compiler_params=pltpu.CompilerParams(
            dimension_semantics=("parallel",)),
        cost_estimate=pl.CostEstimate(
            flops=flops, transcendentals=0, bytes_accessed=bytes_accessed),
    )(act, W_all, Wfc_hT, bfc)
    return out[0, :B]                                 # (B,), matches PyTorch


# ----------------------------------------------------------------------------
# Pure-JAX reference (mirrors the PyTorch forward exactly, unfused).
# ----------------------------------------------------------------------------
def caser_reference(params, user_id, seq, item_id):
    E = params["Q"][seq]
    U = params["P"][user_id]
    Qp = params["Qp"][item_id]
    Bi = params["b"][item_id][:, 0]
    Wv, bv = params["Wv"], params["bv"]
    Wfc, bfc = params["Wfc"], params["bfc"]
    B, L, F = E.shape
    d_prime = Wv.shape[0]

    out_v = jnp.einsum("blf,cl->bcf", E, Wv) + bv[None, :, None]
    out_v = out_v.reshape(B, d_prime * F)

    pools = []
    for hi, (Whh, bhh) in enumerate(zip(params["Wh_list"], params["bh_list"])):
        h = hi + 1
        conv = jnp.stack(
            [jnp.einsum("bjf,cjf->bc", E[:, t:t + h, :], Whh)
             for t in range(L - h + 1)], axis=-1) + bhh[None, :, None]
        pools.append(jnp.max(conv, axis=-1))
    out_h = jnp.concatenate(pools, axis=1)

    out = jnp.concatenate([out_v, out_h], axis=1)
    z = out @ Wfc.T + bfc
    x = jnp.concatenate([z, U], axis=1)
    return jnp.sum(x * Qp, axis=1) + Bi


# ----------------------------------------------------------------------------
# Deterministic parameter construction (shapes from Caser.__init__).
# ----------------------------------------------------------------------------
def make_params(key, num_factors, num_users, num_items, L, d, d_prime):
    ks = jax.random.split(key, 8 + 2 * L)
    F = num_factors
    fc_in = d_prime * F + d * L

    def rnd(k, shape):
        return jax.random.normal(k, shape, dtype=jnp.float32) * 0.1

    Wh_list = [rnd(ks[8 + hi], (d, hi + 1, F)) for hi in range(L)]
    bh_list = [rnd(ks[8 + L + hi], (d,)) for hi in range(L)]

    return {
        "P": rnd(ks[0], (num_users, F)),             # user embedding
        "Q": rnd(ks[1], (num_items, F)),             # item embedding
        "Wv": rnd(ks[2], (d_prime, L)),              # conv_v weight (d',1,L,1)
        "bv": rnd(ks[3], (d_prime,)),
        "Wh_list": Wh_list, "bh_list": bh_list,
        "Wfc": rnd(ks[4], (F, fc_in)),               # fc weight
        "bfc": rnd(ks[5], (F,)),
        "Qp": rnd(ks[6], (num_items, 2 * F)),        # Q_prime embedding
        "b": rnd(ks[7], (num_items, 1)),             # item bias embedding
    }


if __name__ == "__main__":
    num_factors, num_users, num_items = 16, 10, 20
    L, d, d_prime = 5, 16, 4
    B = 4

    key = jax.random.PRNGKey(0)
    kp, ku, ks, ki = jax.random.split(key, 4)
    params = make_params(kp, num_factors, num_users, num_items, L, d, d_prime)

    # Weight packing is hoisted out of the forward pass (model-load time).
    W_all, Wfc_hT, bfc_fused = pack_params(params, L, d, d_prime, num_factors)
    packed = {"P": params["P"], "Q": params["Q"], "Qp": params["Qp"],
              "b": params["b"], "W_all": W_all, "Wfc_hT": Wfc_hT,
              "bfc": bfc_fused}

    user_id = jax.random.randint(ku, (B,), 0, num_users)
    seq = jax.random.randint(ks, (B, L), 0, num_items)
    item_id = jax.random.randint(ki, (B,), 0, num_items)

    out = jax.block_until_ready(caser_forward(packed, user_id, seq, item_id))

    ref = caser_reference(params, user_id, seq, item_id)
    np.testing.assert_allclose(np.asarray(out), np.asarray(ref),
                               rtol=1e-4, atol=1e-4)
    print("KERNEL_OK")
</pallas_src>

<mosaic_0001>
module attributes {stable_mosaic.version = 11 : i64} {
  func.func @caser_kernel(%arg0: i32, %arg1: memref<8x256xf32, #tpu.memory_space<vmem>>, %arg2: memref<128x768xf32, #tpu.memory_space<vmem>>, %arg3: memref<128x16xf32, #tpu.memory_space<vmem>>, %arg4: memref<1x16xf32, #tpu.memory_space<vmem>>, %arg5: memref<8x8xf32, #tpu.memory_space<vmem>>) attributes {dimension_semantics = [#tpu.dimension_semantics<parallel>], iteration_bounds = array<i64: 1>, scalar_prefetch = 0 : i64, scratch_operands = 0 : i64, tpu.core_type = #tpu.core_type<tc>, window_params = [{transform_indices = @transform_0, window_bounds = array<i64: 8, 256>}, {pipeline_mode = #tpu.pipeline_mode<synchronous>, transform_indices = @transform_1, window_bounds = array<i64: 128, 768>}, {pipeline_mode = #tpu.pipeline_mode<synchronous>, transform_indices = @transform_2, window_bounds = array<i64: 128, 16>}, {pipeline_mode = #tpu.pipeline_mode<synchronous>, transform_indices = @transform_3, window_bounds = array<i64: 1, 16>}, {transform_indices = @transform_4, window_bounds = array<i64: 8, 8>}]} {
    %c0 = arith.constant 0 : index
    %c0_0 = arith.constant 0 : index
    %0 = vector.load %arg1[%c0, %c0_0] : memref<8x256xf32, #tpu.memory_space<vmem>>, vector<8x256xf32>
    %1 = vector.extract_strided_slice %0 {offsets = [0, 0], sizes = [8, 128], strides = [1, 1]} : vector<8x256xf32> to vector<8x128xf32>
    %2 = vector.extract_strided_slice %0 {offsets = [0, 128], sizes = [8, 16], strides = [1, 1]} : vector<8x256xf32> to vector<8x16xf32>
    %3 = vector.extract_strided_slice %0 {offsets = [0, 144], sizes = [8, 17], strides = [1, 1]} : vector<8x256xf32> to vector<8x17xf32>
    %4 = vector.extract_strided_slice %0 {offsets = [0, 161], sizes = [8, 17], strides = [1, 1]} : vector<8x256xf32> to vector<8x17xf32>
    %c0_1 = arith.constant 0 : index
    %c0_2 = arith.constant 0 : index
    %5 = vector.load %arg2[%c0_1, %c0_2] : memref<128x768xf32, #tpu.memory_space<vmem>>, vector<128x768xf32>
    %cst = arith.constant dense<0.000000e+00> : vector<8x768xf32>
    %6 = tpu.matmul %1, %5, %cst {dimension_numbers = #tpu.dot_dimension_numbers<[1], [0], [0], [1], [0, 0, 1, 1], [], []>} : vector<8x128xf32>, vector<128x768xf32>, vector<8x768xf32> -> vector<8x768xf32>
    %7 = vector.extract_strided_slice %6 {offsets = [0, 0], sizes = [8, 128], strides = [1, 1]} : vector<8x768xf32> to vector<8x128xf32>
    %8 = vector.extract_strided_slice %6 {offsets = [0, 128], sizes = [8, 128], strides = [1, 1]} : vector<8x768xf32> to vector<8x128xf32>
    %9 = arith.maximumf %7, %8 : vector<8x128xf32>
    %10 = vector.extract_strided_slice %6 {offsets = [0, 256], sizes = [8, 128], strides = [1, 1]} : vector<8x768xf32> to vector<8x128xf32>
    %11 = arith.maximumf %9, %10 : vector<8x128xf32>
    %12 = vector.extract_strided_slice %6 {offsets = [0, 384], sizes = [8, 128], strides = [1, 1]} : vector<8x768xf32> to vector<8x128xf32>
    %13 = arith.maximumf %11, %12 : vector<8x128xf32>
    %14 = vector.extract_strided_slice %6 {offsets = [0, 512], sizes = [8, 128], strides = [1, 1]} : vector<8x768xf32> to vector<8x128xf32>
    %15 = arith.maximumf %13, %14 : vector<8x128xf32>
    %16 = vector.extract_strided_slice %6 {offsets = [0, 640], sizes = [8, 16], strides = [1, 1]} : vector<8x768xf32> to vector<8x16xf32>
    %c0_3 = arith.constant 0 : index
    %c0_4 = arith.constant 0 : index
    %17 = vector.load %arg3[%c0_3, %c0_4] : memref<128x16xf32, #tpu.memory_space<vmem>>, vector<128x16xf32>
    %cst_5 = arith.constant dense<0.000000e+00> : vector<8x16xf32>
    %18 = tpu.matmul %15, %17, %cst_5 {dimension_numbers = #tpu.dot_dimension_numbers<[1], [0], [0], [1], [0, 0, 1, 1], [], []>} : vector<8x128xf32>, vector<128x16xf32>, vector<8x16xf32> -> vector<8x16xf32>
    %19 = arith.addf %16, %18 : vector<8x16xf32>
    %c0_6 = arith.constant 0 : index
    %c0_7 = arith.constant 0 : index
    %20 = vector.load %arg4[%c0_6, %c0_7] : memref<1x16xf32, #tpu.memory_space<vmem>>, vector<1x16xf32>
    %21 = vector.broadcast %20 : vector<1x16xf32> to vector<8x16xf32>
    %22 = arith.addf %19, %21 : vector<8x16xf32>
    %cst_8 = arith.constant 1.000000e+00 : f32
    %23 = vector.broadcast %cst_8 : f32 to vector<8x16xf32>
    %24 = arith.mulf %22, %2 : vector<8x16xf32>
    %cst_9 = arith.constant dense<0.000000e+00> : vector<8x8xf32>
    %25 = tpu.matmul %23, %24, %cst_9 {dimension_numbers = #tpu.dot_dimension_numbers<[1], [1], [0], [0], [0, 0, 1, 0], [], []>} : vector<8x16xf32>, vector<8x16xf32>, vector<8x8xf32> -> vector<8x8xf32>
    %cst_10 = arith.constant 1.000000e+00 : f32
    %26 = vector.broadcast %cst_10 : f32 to vector<8x17xf32>
    %27 = arith.mulf %3, %4 : vector<8x17xf32>
    %cst_11 = arith.constant dense<0.000000e+00> : vector<8x8xf32>
    %28 = tpu.matmul %26, %27, %cst_11 {dimension_numbers = #tpu.dot_dimension_numbers<[1], [1], [0], [0], [0, 0, 1, 0], [], []>} : vector<8x17xf32>, vector<8x17xf32>, vector<8x8xf32> -> vector<8x8xf32>
    %29 = arith.addf %25, %28 : vector<8x8xf32>
    %c0_12 = arith.constant 0 : index
    %c0_13 = arith.constant 0 : index
    %30 = vector.load %arg5[%c0_12, %c0_13] : memref<8x8xf32, #tpu.memory_space<vmem>>, vector<8x8xf32>
    tpu.vector_store %arg5[%c0_12, %c0_13], %29 {strides = array<i32>} : memref<8x8xf32, #tpu.memory_space<vmem>>, vector<8x8xf32>,
    return
  }
  func.func @transform_0(%arg0: i32) -> (i32, i32) {
    %c0_i32 = arith.constant 0 : i32
    %c0_i32_0 = arith.constant 0 : i32
    return %arg0, %c0_i32 : i32, i32
  }
  func.func @transform_1(%arg0: i32) -> (i32, i32) {
    %c0_i32 = arith.constant 0 : i32
    %c0_i32_0 = arith.constant 0 : i32
    %c0_i32_1 = arith.constant 0 : i32
    return %c0_i32, %c0_i32_0 : i32, i32
  }
  func.func @transform_2(%arg0: i32) -> (i32, i32) {
    %c0_i32 = arith.constant 0 : i32
    %c0_i32_0 = arith.constant 0 : i32
    %c0_i32_1 = arith.constant 0 : i32
    return %c0_i32, %c0_i32_0 : i32, i32
  }
  func.func @transform_3(%arg0: i32) -> (i32, i32) {
    %c0_i32 = arith.constant 0 : i32
    %c0_i32_0 = arith.constant 0 : i32
    %c0_i32_1 = arith.constant 0 : i32
    return %c0_i32, %c0_i32_0 : i32, i32
  }
  func.func @transform_4(%arg0: i32) -> (i32, i32) {
    %c0_i32 = arith.constant 0 : i32
    %c0_i32_0 = arith.constant 0 : i32
    return %c0_i32, %arg0 : i32, i32
  }
}

</mosaic_0001>

<llo_original>
// kernel: caser_forward.1
$region0: #{caser_forward.1}
  #allocation0 [shape = 'u32[]', space=smem, size = 0x4, offset = 0x4, fixed_abs, tag = 'smem constant byte address 0x4 - core index']
  #allocation1 [shape = 'u32[144,128]{1,0:T(1,128)}', space=vmem, size = 0x12000, scoped, tag = 'internal scratch']
  %s0 = inlined_call_operand.vmem [shape: f32[8,256], index: 0, kind: input, shape index: {}]
  %s1 = inlined_call_operand.vmem [shape: f32[128,768], index: 1, kind: input, shape index: {}]
  %s2 = inlined_call_operand.vmem [shape: f32[128,16], index: 2, kind: input, shape index: {}]
  %s3 = inlined_call_operand.vmem [shape: f32[1,16], index: 3, kind: input, shape index: {}]
  %s4 = inlined_call_operand.vmem [shape: f32[8,8], index: 4, kind: output, shape index: {}]
  %s5 = sld [smem:[#allocation0]]
  $region26: #{caser_forward.1} parent=0
    _
  %s7 = ssub.s32 1, %s5
  %s8 = scalar_select 0, %s7, %s5
  // Predicated region
  $region2: #{caser_forward.1} parent=0 // pred_check
    _
  $region3: #{caser_forward.1} parent=0 // pred_check_branch
    %10 = sbr.rel (0) target = $region5
  $region4: #{caser_forward.1} parent=0 // pred_region
    _
  $region5: #{caser_forward.1} parent=0 // pred_fallthru
    _
  // Predicated region
  $region6: #{caser_forward.1} parent=0 // pred_check
    _
  $region7: #{caser_forward.1} parent=0 // pred_check_branch
    %12 = sbr.rel (0) target = $region9
  $region8: #{caser_forward.1} parent=0 // pred_region
    _
  $region9: #{caser_forward.1} parent=0 // pred_fallthru
    _
  // Predicated region
  $region10: #{caser_forward.1} parent=0 // pred_check
    _
  $region11: #{caser_forward.1} parent=0 // pred_check_branch
    %14 = sbr.rel (0) target = $region13
  $region12: #{caser_forward.1} parent=0 // pred_region
    _
  $region13: #{caser_forward.1} parent=0 // pred_fallthru
    _
  // Predicated region
  $region14: #{caser_forward.1} parent=0 // pred_check
    _
  $region15: #{caser_forward.1} parent=0 // pred_check_branch
    %16 = sbr.rel (0) target = $region17
  $region16: #{caser_forward.1} parent=0 // pred_region
    _
  $region17: #{caser_forward.1} parent=0 // pred_fallthru
    _
  %v17 = vld [vmem:[%s0] sm:$0xff]
  %v18 = vld [vmem:[%s0 + $0x8] sm:$0xff]
  %v19 = vld [vmem:[%s1] sm:$0xff]
  %v20 = vld [vmem:[%s1 + $0x8] sm:$0xff]
  %v21 = vld [vmem:[%s1 + $0x10] sm:$0xff]
  %v22 = vld [vmem:[%s1 + $0x18] sm:$0xff]
  %v23 = vld [vmem:[%s1 + $0x20] sm:$0xff]
  %v24 = vld [vmem:[%s1 + $0x28] sm:$0xff]
  %v25 = vld [vmem:[%s1 + $0x30] sm:$0xff]
  %v26 = vld [vmem:[%s1 + $0x38] sm:$0xff]
  %v27 = vld [vmem:[%s1 + $0x40] sm:$0xff]
  %v28 = vld [vmem:[%s1 + $0x48] sm:$0xff]
  %v29 = vld [vmem:[%s1 + $0x50] sm:$0xff]
  %v30 = vld [vmem:[%s1 + $0x58] sm:$0xff]
  %v31 = vld [vmem:[%s1 + $0x60] sm:$0xff]
  %v32 = vld [vmem:[%s1 + $0x68] sm:$0xff]
  %v33 = vld [vmem:[%s1 + $0x70] sm:$0xff]
  %v34 = vld [vmem:[%s1 + $0x78] sm:$0xff]
  %v35 = vld [vmem:[%s1 + $0x80] sm:$0xff]
  %v36 = vld [vmem:[%s1 + $0x88] sm:$0xff]
  %v37 = vld [vmem:[%s1 + $0x90] sm:$0xff]
  %v38 = vld [vmem:[%s1 + $0x98] sm:$0xff]
  %v39 = vld [vmem:[%s1 + $0xa0] sm:$0xff]
  %v40 = vld [vmem:[%s1 + $0xa8] sm:$0xff]
  %v41 = vld [vmem:[%s1 + $0xb0] sm:$0xff]
  %v42 = vld [vmem:[%s1 + $0xb8] sm:$0xff]
  %v43 = vld [vmem:[%s1 + $0xc0] sm:$0xff]
  %v44 = vld [vmem:[%s1 + $0xc8] sm:$0xff]
  %v45 = vld [vmem:[%s1 + $0xd0] sm:$0xff]
  %v46 = vld [vmem:[%s1 + $0xd8] sm:$0xff]
  %v47 = vld [vmem:[%s1 + $0xe0] sm:$0xff]
  %v48 = vld [vmem:[%s1 + $0xe8] sm:$0xff]
  %v49 = vld [vmem:[%s1 + $0xf0] sm:$0xff]
  %v50 = vld [vmem:[%s1 + $0xf8] sm:$0xff]
  %v51 = vld [vmem:[%s1 + $0x100] sm:$0xff]
  %v52 = vld [vmem:[%s1 + $0x108] sm:$0xff]
  %v53 = vld [vmem:[%s1 + $0x110] sm:$0xff]
  %v54 = vld [vmem:[%s1 + $0x118] sm:$0xff]
  %v55 = vld [vmem:[%s1 + $0x120] sm:$0xff]
  %v56 = vld [vmem:[%s1 + $0x128] sm:$0xff]
  %v57 = vld [vmem:[%s1 + $0x130] sm:$0xff]
  %v58 = vld [vmem:[%s1 + $0x138] sm:$0xff]
  %v59 = vld [vmem:[%s1 + $0x140] sm:$0xff]
  %v60 = vld [vmem:[%s1 + $0x148] sm:$0xff]
  %v61 = vld [vmem:[%s1 + $0x150] sm:$0xff]
  %v62 = vld [vmem:[%s1 + $0x158] sm:$0xff]
  %v63 = vld [vmem:[%s1 + $0x160] sm:$0xff]
  %v64 = vld [vmem:[%s1 + $0x168] sm:$0xff]
  %v65 = vld [vmem:[%s1 + $0x170] sm:$0xff]
  %v66 = vld [vmem:[%s1 + $0x178] sm:$0xff]
  %v67 = vld [vmem:[%s1 + $0x180] sm:$0xff]
  %v68 = vld [vmem:[%s1 + $0x188] sm:$0xff]
  %v69 = vld [vmem:[%s1 + $0x190] sm:$0xff]
  %v70 = vld [vmem:[%s1 + $0x198] sm:$0xff]
  %v71 = vld [vmem:[%s1 + $0x1a0] sm:$0xff]
  %v72 = vld [vmem:[%s1 + $0x1a8] sm:$0xff]
  %v73 = vld [vmem:[%s1 + $0x1b0] sm:$0xff]
  %v74 = vld [vmem:[%s1 + $0x1b8] sm:$0xff]
  %v75 = vld [vmem:[%s1 + $0x1c0] sm:$0xff]
  %v76 = vld [vmem:[%s1 + $0x1c8] sm:$0xff]
  %v77 = vld [vmem:[%s1 + $0x1d0] sm:$0xff]
  %v78 = vld [vmem:[%s1 + $0x1d8] sm:$0xff]
  %v79 = vld [vmem:[%s1 + $0x1e0] sm:$0xff]
  %v80 = vld [vmem:[%s1 + $0x1e8] sm:$0xff]
  %v81 = vld [vmem:[%s1 + $0x1f0] sm:$0xff]
  %v82 = vld [vmem:[%s1 + $0x1f8] sm:$0xff]
  %v83 = vld [vmem:[%s1 + $0x200] sm:$0xff]
  %v84 = vld [vmem:[%s1 + $0x208] sm:$0xff]
  %v85 = vld [vmem:[%s1 + $0x210] sm:$0xff]
  %v86 = vld [vmem:[%s1 + $0x218] sm:$0xff]
  %v87 = vld [vmem:[%s1 + $0x220] sm:$0xff]
  %v88 = vld [vmem:[%s1 + $0x228] sm:$0xff]
  %v89 = vld [vmem:[%s1 + $0x230] sm:$0xff]
  %v90 = vld [vmem:[%s1 + $0x238] sm:$0xff]
  %v91 = vld [vmem:[%s1 + $0x240] sm:$0xff]
  %v92 = vld [vmem:[%s1 + $0x248] sm:$0xff]
  %v93 = vld [vmem:[%s1 + $0x250] sm:$0xff]
  %v94 = vld [vmem:[%s1 + $0x258] sm:$0xff]
  %v95 = vld [vmem:[%s1 + $0x260] sm:$0xff]
  %v96 = vld [vmem:[%s1 + $0x268] sm:$0xff]
  %v97 = vld [vmem:[%s1 + $0x270] sm:$0xff]
  %v98 = vld [vmem:[%s1 + $0x278] sm:$0xff]
  %v99 = vld [vmem:[%s1 + $0x280] sm:$0xff]
  %v100 = vld [vmem:[%s1 + $0x288] sm:$0xff]
  %v101 = vld [vmem:[%s1 + $0x290] sm:$0xff]
  %v102 = vld [vmem:[%s1 + $0x298] sm:$0xff]
  %v103 = vld [vmem:[%s1 + $0x2a0] sm:$0xff]
  %v104 = vld [vmem:[%s1 + $0x2a8] sm:$0xff]
  %v105 = vld [vmem:[%s1 + $0x2b0] sm:$0xff]
  %v106 = vld [vmem:[%s1 + $0x2b8] sm:$0xff]
  %v107 = vld [vmem:[%s1 + $0x2c0] sm:$0xff]
  %v108 = vld [vmem:[%s1 + $0x2c8] sm:$0xff]
  %v109 = vld [vmem:[%s1 + $0x2d0] sm:$0xff]
  %v110 = vld [vmem:[%s1 + $0x2d8] sm:$0xff]
  %v111 = vld [vmem:[%s1 + $0x2e0] sm:$0xff]
  %v112 = vld [vmem:[%s1 + $0x2e8] sm:$0xff]
  %v113 = vld [vmem:[%s1 + $0x2f0] sm:$0xff]
  %v114 = vld [vmem:[%s1 + $0x2f8] sm:$0xff]
  %115 = vmatprep.subr.mxu0 %v20
  %116 = vmatpush1.msra.mxu0 %v19
  %117 = vmatprep.subr.mxu0 %v26
  %118 = vmatpush1.msra.mxu0 %v25
  %119 = vmatprep.subr.mxu0 %v32
  %120 = vmatpush1.msra.mxu0 %v31
  %121 = vmatprep.subr.mxu0 %v38
  %122 = vmatpush1.msra.mxu0 %v37
  %123 = vmatprep.subr.mxu0 %v44
  %124 = vmatpush1.msra.mxu0 %v43
  %125 = vmatprep.subr.mxu0 %v50
  %126 = vmatpush1.msra.mxu0 %v49
  %127 = vmatprep.subr.mxu0 %v56
  %128 = vmatpush1.msra.mxu0 %v55
  %129 = vmatprep.subr.mxu0 %v62
  %130 = vmatpush1.msra.mxu0 %v61
  %131 = vmatprep.subr.mxu0 %v68
  %132 = vmatpush1.msra.mxu0 %v67
  %133 = vmatprep.subr.mxu0 %v74
  %134 = vmatpush1.msra.mxu0 %v73
  %135 = vmatprep.subr.mxu0 %v80
  %136 = vmatpush1.msra.mxu0 %v79
  %137 = vmatprep.subr.mxu0 %v86
  %138 = vmatpush1.msra.mxu0 %v85
  %139 = vmatprep.subr.mxu0 %v92
  %140 = vmatpush1.msra.mxu0 %v91
  %141 = vmatprep.subr.mxu0 %v98
  %142 = vmatpush1.msra.mxu0 %v97
  %143 = vmatprep.subr.mxu0 %v104
  %144 = vmatpush1.msra.mxu0 %v103
  %145 = vmatprep.subr.mxu0 %v110
  %146 = vmatpush1.msra.mxu0 %v109
  %147 = vmatprep.subr.mxu0 0.0
  %148 = vmatpush1.msra.mxu0 0.0
  %149 = vmatprep.subr.mxu0 0.0
  %150 = vmatpush1.msra.mxu0 0.0
  %151 = vmatprep.subr.mxu0 0.0
  %152 = vmatpush1.msra.mxu0 0.0
  %153 = vmatprep.subr.mxu0 0.0
  %154 = vmatpush1.msra.mxu0 0.0
  %155 = vmatprep.subr.mxu0 0.0
  %156 = vmatpush1.msra.mxu0 0.0
  %157 = vmatprep.subr.mxu0 0.0
  %158 = vmatpush1.msra.mxu0 0.0
  %159 = vmatprep.subr.mxu0 0.0
  %160 = vmatpush1.msra.mxu0 0.0
  %161 = vmatprep.subr.mxu0 0.0
  %162 = vmatpush1.msra.mxu0 0.0
  %163 = vmatprep.subr.mxu0 0.0
  %164 = vmatpush1.msra.mxu0 0.0
  %165 = vmatprep.subr.mxu0 0.0
  %166 = vmatpush1.msra.mxu0 0.0
  %167 = vmatprep.subr.mxu0 0.0
  %168 = vmatpush1.msra.mxu0 0.0
  %169 = vmatprep.subr.mxu0 0.0
  %170 = vmatpush1.msra.mxu0 0.0
  %171 = vmatprep.subr.mxu0 0.0
  %172 = vmatpush1.msra.mxu0 0.0
  %173 = vmatprep.subr.mxu0 0.0
  %174 = vmatpush1.msra.mxu0 0.0
  %175 = vmatprep.subr.mxu0 0.0
  %176 = vmatpush1.msra.mxu0 0.0
  %177 = vmatprep.subr.mxu0 0.0
  %178 = vmatpush1.msra.mxu0 0.0
  %179 = vmatprep.mubr.f32.mxu0 0.0
  %180 = vmatmul.mubr.f32.gmra.mrb[0].mxu0 %v17
  %v181 = vpop.f32.mrb[0].mxu0
  %v182 = vadd.f32 0.0, %v181
  %v183 = vpop.f32.mrb[0].mxu0
  %v184 = vadd.f32 0.0, %v183
  %185 = vdwg.mxu0
  %186 = vmatprep.subr.mxu0 %v22
  %187 = vmatpush1.msra.mxu0 %v21
  %188 = vmatprep.subr.mxu0 %v28
  %189 = vmatpush1.msra.mxu0 %v27
  %190 = vmatprep.subr.mxu0 %v34
  %191 = vmatpush1.msra.mxu0 %v33
  %192 = vmatprep.subr.mxu0 %v40
  %193 = vmatpush1.msra.mxu0 %v39
  %194 = vmatprep.subr.mxu0 %v46
  %195 = vmatpush1.msra.mxu0 %v45
  %196 = vmatprep.subr.mxu0 %v52
  %197 = vmatpush1.msra.mxu0 %v51
  %198 = vmatprep.subr.mxu0 %v58
  %199 = vmatpush1.msra.mxu0 %v57
  %200 = vmatprep.subr.mxu0 %v64
  %201 = vmatpush1.msra.mxu0 %v63
  %202 = vmatprep.subr.mxu0 %v70
  %203 = vmatpush1.msra.mxu0 %v69
  %204 = vmatprep.subr.mxu0 %v76
  %205 = vmatpush1.msra.mxu0 %v75
  %206 = vmatprep.subr.mxu0 %v82
  %207 = vmatpush1.msra.mxu0 %v81
  %208 = vmatprep.subr.mxu0 %v88
  %209 = vmatpush1.msra.mxu0 %v87
  %210 = vmatprep.subr.mxu0 %v94
  %211 = vmatpush1.msra.mxu0 %v93
  %212 = vmatprep.subr.mxu0 %v100
  %213 = vmatpush1.msra.mxu0 %v99
  %214 = vmatprep.subr.mxu0 %v106
  %215 = vmatpush1.msra.mxu0 %v105
  %216 = vmatprep.subr.mxu0 %v112
  %217 = vmatpush1.msra.mxu0 %v111
  %218 = vmatprep.subr.mxu0 0.0
  %219 = vmatpush1.msra.mxu0 0.0
  %220 = vmatprep.subr.mxu0 0.0
  %221 = vmatpush1.msra.mxu0 0.0
  %222 = vmatprep.subr.mxu0 0.0
  %223 = vmatpush1.msra.mxu0 0.0
  %224 = vmatprep.subr.mxu0 0.0
  %225 = vmatpush1.msra.mxu0 0.0
  %226 = vmatprep.subr.mxu0 0.0
  %227 = vmatpush1.msra.mxu0 0.0
  %228 = vmatprep.subr.mxu0 0.0
  %229 = vmatpush1.msra.mxu0 0.0
  %230 = vmatprep.subr.mxu0 0.0
  %231 = vmatpush1.msra.mxu0 0.0
  %232 = vmatprep.subr.mxu0 0.0
  %233 = vmatpush1.msra.mxu0 0.0
  %234 = vmatprep.subr.mxu0 0.0
  %235 = vmatpush1.msra.mxu0 0.0
  %236 = vmatprep.subr.mxu0 0.0
  %237 = vmatpush1.msra.mxu0 0.0
  %238 = vmatprep.subr.mxu0 0.0
  %239 = vmatpush1.msra.mxu0 0.0
  %240 = vmatprep.subr.mxu0 0.0
  %241 = vmatpush1.msra.mxu0 0.0
  %242 = vmatprep.subr.mxu0 0.0
  %243 = vmatpush1.msra.mxu0 0.0
  %244 = vmatprep.subr.mxu0 0.0
  %245 = vmatpush1.msra.mxu0 0.0
  %246 = vmatprep.subr.mxu0 0.0
  %247 = vmatpush1.msra.mxu0 0.0
  %248 = vmatprep.subr.mxu0 0.0
  %249 = vmatpush1.msra.mxu0 0.0
  %250 = vmatprep.mubr.f32.mxu0 0.0
  %251 = vmatmul.mubr.f32.gmra.mrb[0].mxu0 %v17
  %v252 = vpop.f32.mrb[0].mxu0
  %v253 = vadd.f32 0.0, %v252
  %v254 = vpop.f32.mrb[0].mxu0
  %v255 = vadd.f32 0.0, %v254
  %256 = vdwg.mxu0
  %257 = vmatprep.subr.mxu0 %v24
  %258 = vmatpush1.msra.mxu0 %v23
  %259 = vmatprep.subr.mxu0 %v30
  %260 = vmatpush1.msra.mxu0 %v29
  %261 = vmatprep.subr.mxu0 %v36
  %262 = vmatpush1.msra.mxu0 %v35
  %263 = vmatprep.subr.mxu0 %v42
  %264 = vmatpush1.msra.mxu0 %v41
  %265 = vmatprep.subr.mxu0 %v48
  %266 = vmatpush1.msra.mxu0 %v47
  %267 = vmatprep.subr.mxu0 %v54
  %268 = vmatpush1.msra.mxu0 %v53
  %269 = vmatprep.subr.mxu0 %v60
  %270 = vmatpush1.msra.mxu0 %v59
  %271 = vmatprep.subr.mxu0 %v66
  %272 = vmatpush1.msra.mxu0 %v65
  %273 = vmatprep.subr.mxu0 %v72
  %274 = vmatpush1.msra.mxu0 %v71
  %275 = vmatprep.subr.mxu0 %v78
  %276 = vmatpush1.msra.mxu0 %v77
  %277 = vmatprep.subr.mxu0 %v84
  %278 = vmatpush1.msra.mxu0 %v83
  %279 = vmatprep.subr.mxu0 %v90
  %280 = vmatpush1.msra.mxu0 %v89
  %281 = vmatprep.subr.mxu0 %v96
  %282 = vmatpush1.msra.mxu0 %v95
  %283 = vmatprep.subr.mxu0 %v102
  %284 = vmatpush1.msra.mxu0 %v101
  %285 = vmatprep.subr.mxu0 %v108
  %286 = vmatpush1.msra.mxu0 %v107
  %287 = vmatprep.subr.mxu0 %v114
  %288 = vmatpush1.msra.mxu0 %v113
  %289 = vmatprep.subr.mxu0 0.0
  %290 = vmatpush1.msra.mxu0 0.0
  %291 = vmatprep.subr.mxu0 0.0
  %292 = vmatpush1.msra.mxu0 0.0
  %293 = vmatprep.subr.mxu0 0.0
  %294 = vmatpush1.msra.mxu0 0.0
  %295 = vmatprep.subr.mxu0 0.0
  %296 = vmatpush1.msra.mxu0 0.0
  %297 = vmatprep.subr.mxu0 0.0
  %298 = vmatpush1.msra.mxu0 0.0
  %299 = vmatprep.subr.mxu0 0.0
  %300 = vmatpush1.msra.mxu0 0.0
  %301 = vmatprep.subr.mxu0 0.0
  %302 = vmatpush1.msra.mxu0 0.0
  %303 = vmatprep.subr.mxu0 0.0
  %304 = vmatpush1.msra.mxu0 0.0
  %305 = vmatprep.subr.mxu0 0.0
  %306 = vmatpush1.msra.mxu0 0.0
  %307 = vmatprep.subr.mxu0 0.0
  %308 = vmatpush1.msra.mxu0 0.0
  %309 = vmatprep.subr.mxu0 0.0
  %310 = vmatpush1.msra.mxu0 0.0
  %311 = vmatprep.subr.mxu0 0.0
  %312 = vmatpush1.msra.mxu0 0.0
  %313 = vmatprep.subr.mxu0 0.0
  %314 = vmatpush1.msra.mxu0 0.0
  %315 = vmatprep.subr.mxu0 0.0
  %316 = vmatpush1.msra.mxu0 0.0
  %317 = vmatprep.subr.mxu0 0.0
  %318 = vmatpush1.msra.mxu0 0.0
  %319 = vmatprep.subr.mxu0 0.0
  %320 = vmatpush1.msra.mxu0 0.0
  %321 = vmatprep.mubr.f32.mxu0 0.0
  %322 = vmatmul.mubr.f32.gmra.mrb[0].mxu0 %v17
  %v323 = vpop.f32.mrb[0].mxu0
  %v324 = vadd.f32 0.0, %v323
  %v325 = vpop.f32.mrb[0].mxu0
  %v326 = vadd.f32 0.0, %v325
  %327 = vdwg.mxu0
  %v328 = vmax.f32 %v182, %v184
  %v329 = vmax.f32 %v328, %v253
  %v330 = vmax.f32 %v329, %v255
  %v331 = vmax.f32 %v330, %v324
  %v332 = vld [vmem:[%s2] sm:$0xff]
  %v333 = vld [vmem:[%s2 + $0x8] sm:$0xff]
  %v334 = vld [vmem:[%s2 + $0x10] sm:$0xff]
  %v335 = vld [vmem:[%s2 + $0x18] sm:$0xff]
  %v336 = vld [vmem:[%s2 + $0x20] sm:$0xff]
  %v337 = vld [vmem:[%s2 + $0x28] sm:$0xff]
  %v338 = vld [vmem:[%s2 + $0x30] sm:$0xff]
  %v339 = vld [vmem:[%s2 + $0x38] sm:$0xff]
  %v340 = vld [vmem:[%s2 + $0x40] sm:$0xff]
  %v341 = vld [vmem:[%s2 + $0x48] sm:$0xff]
  %v342 = vld [vmem:[%s2 + $0x50] sm:$0xff]
  %v343 = vld [vmem:[%s2 + $0x58] sm:$0xff]
  %v344 = vld [vmem:[%s2 + $0x60] sm:$0xff]
  %v345 = vld [vmem:[%s2 + $0x68] sm:$0xff]
  %v346 = vld [vmem:[%s2 + $0x70] sm:$0xff]
  %v347 = vld [vmem:[%s2 + $0x78] sm:$0xff]
  %348 = vmatprep.subr.mxu0 0.0
  %349 = vmatpush1.msra.mxu0 %v332
  %350 = vmatprep.subr.mxu0 0.0
  %351 = vmatpush1.msra.mxu0 %v333
  %352 = vmatprep.subr.mxu0 0.0
  %353 = vmatpush1.msra.mxu0 %v334
  %354 = vmatprep.subr.mxu0 0.0
  %355 = vmatpush1.msra.mxu0 %v335
  %356 = vmatprep.subr.mxu0 0.0
  %357 = vmatpush1.msra.mxu0 %v336
  %358 = vmatprep.subr.mxu0 0.0
  %359 = vmatpush1.msra.mxu0 %v337
  %360 = vmatprep.subr.mxu0 0.0
  %361 = vmatpush1.msra.mxu0 %v338
  %362 = vmatprep.subr.mxu0 0.0
  %363 = vmatpush1.msra.mxu0 %v339
  %364 = vmatprep.subr.mxu0 0.0
  %365 = vmatpush1.msra.mxu0 %v340
  %366 = vmatprep.subr.mxu0 0.0
  %367 = vmatpush1.msra.mxu0 %v341
  %368 = vmatprep.subr.mxu0 0.0
  %369 = vmatpush1.msra.mxu0 %v342
  %370 = vmatprep.subr.mxu0 0.0
  %371 = vmatpush1.msra.mxu0 %v343
  %372 = vmatprep.subr.mxu0 0.0
  %373 = vmatpush1.msra.mxu0 %v344
  %374 = vmatprep.subr.mxu0 0.0
  %375 = vmatpush1.msra.mxu0 %v345
  %376 = vmatprep.subr.mxu0 0.0
  %377 = vmatpush1.msra.mxu0 %v346
  %378 = vmatprep.subr.mxu0 0.0
  %379 = vmatpush1.msra.mxu0 %v347
  %380 = vmatprep.subr.mxu0 0.0
  %381 = vmatpush1.msra.mxu0 0.0
  %382 = vmatprep.subr.mxu0 0.0
  %383 = vmatpush1.msra.mxu0 0.0
  %384 = vmatprep.subr.mxu0 0.0
  %385 = vmatpush1.msra.mxu0 0.0
  %386 = vmatprep.subr.mxu0 0.0
  %387 = vmatpush1.msra.mxu0 0.0
  %388 = vmatprep.subr.mxu0 0.0
  %389 = vmatpush1.msra.mxu0 0.0
  %390 = vmatprep.subr.mxu0 0.0
  %391 = vmatpush1.msra.mxu0 0.0
  %392 = vmatprep.subr.mxu0 0.0
  %393 = vmatpush1.msra.mxu0 0.0
  %394 = vmatprep.subr.mxu0 0.0
  %395 = vmatpush1.msra.mxu0 0.0
  %396 = vmatprep.subr.mxu0 0.0
  %397 = vmatpush1.msra.mxu0 0.0
  %398 = vmatprep.subr.mxu0 0.0
  %399 = vmatpush1.msra.mxu0 0.0
  %400 = vmatprep.subr.mxu0 0.0
  %401 = vmatpush1.msra.mxu0 0.0
  %402 = vmatprep.subr.mxu0 0.0
  %403 = vmatpush1.msra.mxu0 0.0
  %404 = vmatprep.subr.mxu0 0.0
  %405 = vmatpush1.msra.mxu0 0.0
  %406 = vmatprep.subr.mxu0 0.0
  %407 = vmatpush1.msra.mxu0 0.0
  %408 = vmatprep.subr.mxu0 0.0
  %409 = vmatpush1.msra.mxu0 0.0
  %410 = vmatprep.subr.mxu0 0.0
  %411 = vmatpush1.msra.mxu0 0.0
  %412 = vmatprep.mubr.f32.mxu0 0.0
  %413 = vmatmul.mubr.f32.gmra.mrb[0].mxu0 %v331
  %v414 = vpop.f32.mrb[0].mxu0
  %v415 = vadd.f32 0.0, %v414
  %v416 = vpop.f32.mrb[0].mxu0
  %417 = vdwg.mxu0
  %v418 = vadd.f32 %v326, %v415
  %v419 = vld [vmem:[%s3] sm:$0x1]
  %v421 = vlaneseq
  %v422 = vshrl.u32 %v421, 7
  %v423 = vsub.s32 0, %v422
  %v424 = vrot.slane %v419, %v423
  %v426 = vadd.f32 %v418, %v424
  %v427 = vmul.f32 %v426, %v18
  %429 = vrot.lane.b32.xlu0 %v18, 111
  %v430 = vpop.permute.xlu0 %429
  %v432 = vmul.f32 %v18, %v430
  %434 = vrot.lane.b32.xlu0 %v432, 112
  %v435 = vpop.permute.xlu0 %434
  %vm436 = vcmask 138240
  %v438 = vsel %vm436, 1.0, 0
  %v440 = vsel %vm436, %v435, 0
  %442 = vmatprep.subr.mxu0 0.0
  %443 = vmatpush1.xpose.msra.mxu0 %v440
  %444 = vmatprep.subr.mxu0 0.0
  %445 = vmatpush1.xpose.msra.mxu0 0.0
  %446 = vmatprep.subr.mxu0 0.0
  %447 = vmatpush1.xpose.msra.mxu0 0.0
  %448 = vmatprep.subr.mxu0 0.0
  %449 = vmatpush1.xpose.msra.mxu0 0.0
  %450 = vmatprep.subr.mxu0 0.0
  %451 = vmatpush1.xpose.msra.mxu0 0.0
  %452 = vmatprep.subr.mxu0 0.0
  %453 = vmatpush1.xpose.msra.mxu0 0.0
  %454 = vmatprep.subr.mxu0 0.0
  %455 = vmatpush1.xpose.msra.mxu0 0.0
  %456 = vmatprep.subr.mxu0 0.0
  %457 = vmatpush1.xpose.msra.mxu0 0.0
  %458 = vmatprep.subr.mxu0 0.0
  %459 = vmatpush1.xpose.msra.mxu0 0.0
  %460 = vmatprep.subr.mxu0 0.0
  %461 = vmatpush1.xpose.msra.mxu0 0.0
  %462 = vmatprep.subr.mxu0 0.0
  %463 = vmatpush1.xpose.msra.mxu0 0.0
  %464 = vmatprep.subr.mxu0 0.0
  %465 = vmatpush1.xpose.msra.mxu0 0.0
  %466 = vmatprep.subr.mxu0 0.0
  %467 = vmatpush1.xpose.msra.mxu0 0.0
  %468 = vmatprep.subr.mxu0 0.0
  %469 = vmatpush1.xpose.msra.mxu0 0.0
  %470 = vmatprep.subr.mxu0 0.0
  %471 = vmatpush1.xpose.msra.mxu0 0.0
  %472 = vmatprep.subr.mxu0 0.0
  %473 = vmatpush1.xpose.msra.mxu0 0.0
  %474 = vmatprep.subr.mxu0 0.0
  %475 = vmatpush1.xpose.msra.mxu0 0.0
  %476 = vmatprep.subr.mxu0 0.0
  %477 = vmatpush1.xpose.msra.mxu0 0.0
  %478 = vmatprep.subr.mxu0 0.0
  %479 = vmatpush1.xpose.msra.mxu0 0.0
  %480 = vmatprep.subr.mxu0 0.0
  %481 = vmatpush1.xpose.msra.mxu0 0.0
  %482 = vmatprep.subr.mxu0 0.0
  %483 = vmatpush1.xpose.msra.mxu0 0.0
  %484 = vmatprep.subr.mxu0 0.0
  %485 = vmatpush1.xpose.msra.mxu0 0.0
  %486 = vmatprep.subr.mxu0 0.0
  %487 = vmatpush1.xpose.msra.mxu0 0.0
  %488 = vmatprep.subr.mxu0 0.0
  %489 = vmatpush1.xpose.msra.mxu0 0.0
  %490 = vmatprep.subr.mxu0 0.0
  %491 = vmatpush1.xpose.msra.mxu0 0.0
  %492 = vmatprep.subr.mxu0 0.0
  %493 = vmatpush1.xpose.msra.mxu0 0.0
  %494 = vmatprep.subr.mxu0 0.0
  %495 = vmatpush1.xpose.msra.mxu0 0.0
  %496 = vmatprep.subr.mxu0 0.0
  %497 = vmatpush1.xpose.msra.mxu0 0.0
  %498 = vmatprep.subr.mxu0 0.0
  %499 = vmatpush1.xpose.msra.mxu0 0.0
  %500 = vmatprep.subr.mxu0 0.0
  %501 = vmatpush1.xpose.msra.mxu0 0.0
  %502 = vmatprep.subr.mxu0 0.0
  %503 = vmatpush1.xpose.msra.mxu0 0.0
  %504 = vmatprep.subr.mxu0 0.0
  %505 = vmatpush1.xpose.msra.mxu0 0.0
  %506 = vmatprep.mubr.f32.mxu0 0.0
  %507 = vmatmul.mubr.f32.gmra.mrb[0].mxu0 %v438
  %v508 = vpop.f32.mrb[0].mxu0
  %v509 = vadd.f32 0.0, %v508
  %v510 = vpop.f32.mrb[0].mxu0
  %511 = vdwg.mxu0
  %vm512 = vcmask 130048
  %v513 = vsel %vm512, 1.0, 0
  %v516 = vsel %vm512, %v427, 0
  %518 = vmatprep.subr.mxu0 0.0
  %519 = vmatpush1.xpose.msra.mxu0 %v516
  %520 = vmatprep.subr.mxu0 0.0
  %521 = vmatpush1.xpose.msra.mxu0 0.0
  %522 = vmatprep.subr.mxu0 0.0
  %523 = vmatpush1.xpose.msra.mxu0 0.0
  %524 = vmatprep.subr.mxu0 0.0
  %525 = vmatpush1.xpose.msra.mxu0 0.0
  %526 = vmatprep.subr.mxu0 0.0
  %527 = vmatpush1.xpose.msra.mxu0 0.0
  %528 = vmatprep.subr.mxu0 0.0
  %529 = vmatpush1.xpose.msra.mxu0 0.0
  %530 = vmatprep.subr.mxu0 0.0
  %531 = vmatpush1.xpose.msra.mxu0 0.0
  %532 = vmatprep.subr.mxu0 0.0
  %533 = vmatpush1.xpose.msra.mxu0 0.0
  %534 = vmatprep.subr.mxu0 0.0
  %535 = vmatpush1.xpose.msra.mxu0 0.0
  %536 = vmatprep.subr.mxu0 0.0
  %537 = vmatpush1.xpose.msra.mxu0 0.0
  %538 = vmatprep.subr.mxu0 0.0
  %539 = vmatpush1.xpose.msra.mxu0 0.0
  %540 = vmatprep.subr.mxu0 0.0
  %541 = vmatpush1.xpose.msra.mxu0 0.0
  %542 = vmatprep.subr.mxu0 0.0
  %543 = vmatpush1.xpose.msra.mxu0 0.0
  %544 = vmatprep.subr.mxu0 0.0
  %545 = vmatpush1.xpose.msra.mxu0 0.0
  %546 = vmatprep.subr.mxu0 0.0
  %547 = vmatpush1.xpose.msra.mxu0 0.0
  %548 = vmatprep.subr.mxu0 0.0
  %549 = vmatpush1.xpose.msra.mxu0 0.0
  %550 = vmatprep.subr.mxu0 0.0
  %551 = vmatpush1.xpose.msra.mxu0 0.0
  %552 = vmatprep.subr.mxu0 0.0
  %553 = vmatpush1.xpose.msra.mxu0 0.0
  %554 = vmatprep.subr.mxu0 0.0
  %555 = vmatpush1.xpose.msra.mxu0 0.0
  %556 = vmatprep.subr.mxu0 0.0
  %557 = vmatpush1.xpose.msra.mxu0 0.0
  %558 = vmatprep.subr.mxu0 0.0
  %559 = vmatpush1.xpose.msra.mxu0 0.0
  %560 = vmatprep.subr.mxu0 0.0
  %561 = vmatpush1.xpose.msra.mxu0 0.0
  %562 = vmatprep.subr.mxu0 0.0
  %563 = vmatpush1.xpose.msra.mxu0 0.0
  %564 = vmatprep.subr.mxu0 0.0
  %565 = vmatpush1.xpose.msra.mxu0 0.0
  %566 = vmatprep.subr.mxu0 0.0
  %567 = vmatpush1.xpose.msra.mxu0 0.0
  %568 = vmatprep.subr.mxu0 0.0
  %569 = vmatpush1.xpose.msra.mxu0 0.0
  %570 = vmatprep.subr.mxu0 0.0
  %571 = vmatpush1.xpose.msra.mxu0 0.0
  %572 = vmatprep.subr.mxu0 0.0
  %573 = vmatpush1.xpose.msra.mxu0 0.0
  %574 = vmatprep.subr.mxu0 0.0
  %575 = vmatpush1.xpose.msra.mxu0 0.0
  %576 = vmatprep.subr.mxu0 0.0
  %577 = vmatpush1.xpose.msra.mxu0 0.0
  %578 = vmatprep.subr.mxu0 0.0
  %579 = vmatpush1.xpose.msra.mxu0 0.0
  %580 = vmatprep.subr.mxu0 0.0
  %581 = vmatpush1.xpose.msra.mxu0 0.0
  %582 = vmatprep.mubr.f32.mxu0 0.0
  %583 = vmatmul.mubr.f32.gmra.mrb[0].mxu0 %v513
  %v584 = vpop.f32.mrb[0].mxu0
  %v585 = vadd.f32 %v509, %v584
  %v586 = vpop.f32.mrb[0].mxu0
  %587 = vdwg.mxu0
  %vm588 = vcmask 64512
  %589 = vst.msk [vmem:[%s4] sm:$0xff] %vm588, %v585
  // Predicated region
  $region18: #{caser_forward.1} parent=0 // pred_check
    _
  $region19: #{caser_forward.1} parent=0 // pred_check_branch
    %591 = sbr.rel (0) target = $region21
  $region20: #{caser_forward.1} parent=0 // pred_region
    _
  $region21: #{caser_forward.1} parent=0 // pred_fallthru
    _
  // Predicated region
  $region22: #{caser_forward.1} parent=0 // pred_check
    _
  $region23: #{caser_forward.1} parent=0 // pred_check_branch
    %593 = sbr.rel (0) target = $region25
  $region24: #{caser_forward.1} parent=0 // pred_region
    _
  $region25: #{caser_forward.1} parent=0 // pred_fallthru
    _

</llo_original>
